<compile_context>
chip_gen: v7x
topology: tpu7x:2x2x1
jax: 0.10.0
libtpu: 0.0.40
codegen_flags: <defaults>
</compile_context>

<pallas_src>
import math
import functools

import jax
import jax.numpy as jnp
from jax import lax
from jax.experimental import pallas as pl
from jax.experimental.pallas import tpu as pltpu


# ---------------------------------------------------------------------------
# In-kernel helpers
# ---------------------------------------------------------------------------
def _layer_norm(x, w, b, eps=1e-12):
    # TF-style LayerNorm (epsilon inside the sqrt); rsqrt+multiply keeps the
    # divide off the VPU (EUP handles the rsqrt).
    u = jnp.mean(x, axis=-1, keepdims=True)
    d = x - u
    s = jnp.mean(d * d, axis=-1, keepdims=True)
    return w * (d * lax.rsqrt(s + eps)) + b


def _gelu(x):
    # Exact gelu: x * 0.5 * (1 + erf(x / sqrt(2)))
    return x * 0.5 * (1.0 + lax.erf(x / math.sqrt(2.0)))


# ---------------------------------------------------------------------------
# Main kernel: one DPP layer per grid step; layers fused along grid axis 1
# ---------------------------------------------------------------------------
def dpp_layer_kernel(
    x_ref, mask_ref,
    wq_ref, bq_ref,                     # attention.query
    wd_ref, bd_ref,                     # attention.dense
    ln1w_ref, ln1b_ref,                 # attention.LayerNorm
    w1_ref, b1_ref, w2_ref, b2_ref,     # intermediate dense_1 / dense_2
    ln2w_ref, ln2b_ref,                 # intermediate.LayerNorm
    out_h_ref, out_p_ref,
    carry_ref,                          # VMEM scratch: hidden state carried across layers
    *, head_size,
):
    l = pl.program_id(1)

    # At the first layer the carry is (re)loaded from the HBM input block.
    @pl.when(l == 0)
    def _():
        carry_ref[...] = x_ref[...]

    x3 = carry_ref[...]                 # (b_blk, S, H)  layer input
    mask = mask_ref[...]                # (b_blk, S, S)  additive attention mask
    b_blk, S, H = x3.shape
    x2 = x3.reshape(b_blk * S, H)       # fold batch rows into M for the MXU

    wdt = wq_ref.dtype
    inv_shs = 1.0 / math.sqrt(head_size)

    # ---- DPP attention ----
    q = jnp.dot(x2.astype(wdt), wq_ref[...],
                preferred_element_type=jnp.float32) + bq_ref[...]
    q2f = q * q
    q2 = q2f.reshape(b_blk, S, H)

    # qk_kernel = q2 @ q2.T per batch row (symmetric Gram matrix -> no transpose)
    K = jnp.einsum("bsh,bth->bst", q2, q2, preferred_element_type=jnp.float32)

    row = lax.broadcasted_iota(jnp.int32, (b_blk, S, S), 1)
    col = lax.broadcasted_iota(jnp.int32, (b_blk, S, S), 2)

    # diag(K) computed directly from q2 (single lane reduce, no SxS masking pass)
    diag = jnp.sum(q2 * q2, axis=-1, keepdims=True)        # (b_blk, S, 1)
    diag_mat = jnp.where(row == col, diag, 0.0)            # diag_embed(diag(K))
    diag_row = jnp.sum(diag_mat, axis=1, keepdims=True)    # (b_blk, 1, S)

    # det of every 2x2 sub-kernel [[K_ii, K_ij],[K_ji, K_jj]] + 1e-5 * I
    eps_sub = 1e-5
    D = (diag + eps_sub) * (diag_row + eps_sub) - K * K    # K symmetric => K*K == K*K.T

    # TODO(synk): PyTorch reference applies torch.triu to a 1-D tensor (would error);
    # we implement the evident intent: sum of the strict upper triangle of D.
    denom = jnp.sum(jnp.sum(jnp.where(col > row, D, 0.0), axis=2, keepdims=True),
                    axis=1, keepdims=True)                  # (b_blk, 1, 1)
    inv_denom = pl.reciprocal(denom, approx=True)           # EUP, no SxS divide

    # scores = -(D/denom + diag_mat)/sqrt(head_size) + mask  (single fused pass)
    scores = D * ((-inv_shs) * inv_denom) - diag_mat * inv_shs + mask

    m = jnp.max(scores, axis=-1, keepdims=True)
    e = jnp.exp(scores - m)
    probs = e * pl.reciprocal(jnp.sum(e, axis=-1, keepdims=True), approx=True)

    # value_layer = input_tensor (the value Linear is unused in the reference forward)
    ctx = jnp.einsum("bst,bth->bsh", probs, x3, preferred_element_type=jnp.float32)
    ctx2 = ctx.reshape(b_blk * S, H)
    h = jnp.dot(ctx2.astype(wdt), wd_ref[...],
                preferred_element_type=jnp.float32) + bd_ref[...]
    h = _layer_norm(h + x2, ln1w_ref[...], ln1b_ref[...])

    # ---- intermediate (hidden path) ----
    t = _gelu(jnp.dot(h.astype(wdt), w1_ref[...],
                      preferred_element_type=jnp.float32) + b1_ref[...])
    t2 = jnp.dot(t.astype(wdt), w2_ref[...],
                 preferred_element_type=jnp.float32) + b2_ref[...]
    h2 = _layer_norm(t2 + h, ln2w_ref[...], ln2b_ref[...])

    h2_3 = h2.reshape(b_blk, S, H)
    carry_ref[...] = h2_3               # feed next layer (stays in VMEM)
    out_h_ref[0] = h2_3
    out_p_ref[0] = probs


# ---------------------------------------------------------------------------
# User-path kernel: layer-invariant, computed exactly once for the encoder
# ---------------------------------------------------------------------------
def user_path_kernel(u_ref, wu1_ref, bu1_ref, wu2_ref, bu2_ref, lnw_ref, lnb_ref,
                     out_ref):
    u = u_ref[...]                      # (B, H)
    wdt = wu1_ref.dtype
    t = _gelu(jnp.dot(u.astype(wdt), wu1_ref[...],
                      preferred_element_type=jnp.float32) + bu1_ref[...])
    t2 = jnp.dot(t.astype(wdt), wu2_ref[...],
                 preferred_element_type=jnp.float32) + bu2_ref[...]
    out_ref[...] = _layer_norm(t2 + u, lnw_ref[...], lnb_ref[...])


# ---------------------------------------------------------------------------
# Wrappers
# ---------------------------------------------------------------------------
def _vmem_limit_bytes():
    # Raise scoped VMEM above the 16/32 MiB defaults, leaving headroom below
    # physical VMEM (128 MiB v5e/v6e, 64 MiB per core v7x).
    try:
        cap = int(pltpu.get_tpu_info().vmem_capacity_bytes)
    except Exception:
        cap = 64 * 1024 * 1024
    return max(32 * 1024 * 1024, min(cap - 8 * 1024 * 1024, 112 * 1024 * 1024))


def _pick_batch_block(B, S, target_rows=512):
    # Fold batch rows into the matmul M dimension (MXU is 256-wide on v6e/v7x),
    # while evenly dividing B.
    best = 1
    for d in range(1, B + 1):
        if B % d == 0 and d * S <= target_rows:
            best = d
    return best


def dpp_layers_pallas(x, mask, params, num_layers, head_size, batch_block):
    B, S, H = x.shape
    H4 = params["w1"].shape[1]
    kernel = functools.partial(dpp_layer_kernel, head_size=head_size)

    def wspec(shape):
        return pl.BlockSpec(shape, lambda i, l: (0, 0))   # all params are 2-D

    in_specs = [
        pl.BlockSpec((batch_block, S, H), lambda i, l: (i, 0, 0)),   # x (layer-0 input)
        pl.BlockSpec((batch_block, S, S), lambda i, l: (i, 0, 0)),   # mask
        wspec((H, H)), wspec((1, H)),          # wq, bq
        wspec((H, H)), wspec((1, H)),          # wd, bd
        wspec((1, H)), wspec((1, H)),          # ln1 w, b
        wspec((H, H4)), wspec((1, H4)),        # w1, b1
        wspec((H4, H)), wspec((1, H)),         # w2, b2
        wspec((1, H)), wspec((1, H)),          # ln2 w, b
    ]
    out_specs = (
        pl.BlockSpec((1, batch_block, S, H), lambda i, l: (l, i, 0, 0)),
        pl.BlockSpec((1, batch_block, S, S), lambda i, l: (l, i, 0, 0)),
    )
    out_shape = (
        jax.ShapeDtypeStruct((num_layers, B, S, H), jnp.float32),
        jax.ShapeDtypeStruct((num_layers, B, S, S), jnp.float32),
    )
    return pl.pallas_call(
        kernel,
        grid=(B // batch_block, num_layers),
        in_specs=in_specs,
        out_specs=out_specs,
        out_shape=out_shape,
        scratch_shapes=[pltpu.VMEM((batch_block, S, H), jnp.float32)],
        compiler_params=pltpu.CompilerParams(
            dimension_semantics=("parallel", "arbitrary"),
            vmem_limit_bytes=_vmem_limit_bytes(),
        ),
    )(
        x, mask,
        params["wq"], params["bq"], params["wd"], params["bd"],
        params["ln1w"], params["ln1b"],
        params["w1"], params["b1"], params["w2"], params["b2"],
        params["ln2w"], params["ln2b"],
    )


def user_path_pallas(user_states, params):
    B, H = user_states.shape
    H4 = params["wu1"].shape[1]

    def full(shape):
        return pl.BlockSpec(shape, lambda i: (0, 0))       # all operands are 2-D

    return pl.pallas_call(
        user_path_kernel,
        grid=(1,),
        in_specs=[full((B, H)),
                  full((H, H4)), full((1, H4)),
                  full((H4, H)), full((1, H)),
                  full((1, H)), full((1, H))],
        out_specs=full((B, H)),
        out_shape=jax.ShapeDtypeStruct((B, H), jnp.float32),
        compiler_params=pltpu.CompilerParams(
            dimension_semantics=("arbitrary",),
            vmem_limit_bytes=_vmem_limit_bytes(),
        ),
    )(user_states, params["wu1"], params["bu1"], params["wu2"], params["bu2"],
      params["lnuw"], params["lnub"])


def dpp_encoder(hidden_states, user_states, attention_mask, user_ids, kkernel,
                params, num_layers, head_size, output_all_encoded_layers=True,
                batch_block=None):
    del user_ids, kkernel                       # unused by the reference forward
    B, S, H = hidden_states.shape
    # [B,1,S,S] -> [B,S,S].  (Not jnp.squeeze: that would also drop B when B == 1.)
    mask = attention_mask[:, 0] if attention_mask.ndim == 4 else attention_mask

    if batch_block is None:
        batch_block = _pick_batch_block(B, S)

    # All layers are copy.deepcopy of one layer (shared weights) and user_states is
    # NOT chained across layers, so the user path is identical for every layer:
    # compute it once instead of num_layers times.
    # TODO(synk): if per-layer parameters are introduced, move this back in the loop.
    hu = user_path_pallas(user_states, params)

    out_h, out_p = dpp_layers_pallas(hidden_states, mask, params,
                                     num_layers, head_size, batch_block)

    all_encoder_layers = []
    if output_all_encoded_layers:
        for l in range(num_layers):
            all_encoder_layers.append([out_h[l], hu, out_p[l]])
    else:
        all_encoder_layers.append([out_h[num_layers - 1], hu, out_p[num_layers - 1]])
    return all_encoder_layers


# ---------------------------------------------------------------------------
# Deterministic parameter init (synthetic; shared by all layers, like deepcopy)
# ---------------------------------------------------------------------------
def init_params(key, H):
    H4 = 4 * H
    ks = jax.random.split(key, 12)
    n = lambda k, shape, s=0.05: (s * jax.random.normal(k, shape)).astype(jnp.float32)
    ones = lambda shape: jnp.ones(shape, jnp.float32)
    zeros = lambda shape: jnp.zeros(shape, jnp.float32)
    return {
        "wq": n(ks[0], (H, H)),   "bq": n(ks[1], (1, H), 0.02),
        "wd": n(ks[2], (H, H)),   "bd": n(ks[3], (1, H), 0.02),
        "ln1w": ones((1, H)),     "ln1b": zeros((1, H)),
        "w1": n(ks[4], (H, H4)),  "b1": n(ks[5], (1, H4), 0.02),
        "w2": n(ks[6], (H4, H)),  "b2": n(ks[7], (1, H), 0.02),
        "ln2w": ones((1, H)),     "ln2b": zeros((1, H)),
        "wu1": n(ks[8], (H, H4)), "bu1": n(ks[9], (1, H4), 0.02),
        "wu2": n(ks[10], (H4, H)),"bu2": n(ks[11], (1, H), 0.02),
        "lnuw": ones((1, H)),     "lnub": zeros((1, H)),
    }


# ---------------------------------------------------------------------------
# Pure-JAX reference (independent math: explicit divides / sqrt)
# ---------------------------------------------------------------------------
def _ref_ln(x, w, b, eps=1e-12):
    u = jnp.mean(x, axis=-1, keepdims=True)
    s = jnp.mean((x - u) ** 2, axis=-1, keepdims=True)
    return w * ((x - u) / jnp.sqrt(s + eps)) + b


def _ref_gelu(x):
    return x * 0.5 * (1.0 + lax.erf(x / math.sqrt(2.0)))


def _ref_layer(x, u, mask, p, head_size):
    hp = lax.Precision.HIGHEST
    q = jnp.matmul(x, p["wq"], precision=hp) + p["bq"]
    q2 = q * q
    K = jnp.einsum("bsh,bth->bst", q2, q2, precision=hp)
    S = x.shape[1]
    diag = jnp.einsum("bsh,bsh->bs", q2, q2, precision=hp)
    dpe = diag + 1e-5
    D = dpe[:, :, None] * dpe[:, None, :] - K * jnp.swapaxes(K, 1, 2)
    triu = jnp.triu(jnp.ones((S, S), jnp.float32), k=1)
    denom = jnp.sum(D * triu, axis=(1, 2), keepdims=True)
    P = D / denom
    diag_mat = jnp.eye(S, dtype=jnp.float32)[None] * diag[:, :, None]
    scores = -(P + diag_mat) / math.sqrt(head_size) + mask
    probs = jax.nn.softmax(scores, axis=-1)
    ctx = jnp.einsum("bst,bth->bsh", probs, x, precision=hp)
    h = jnp.matmul(ctx, p["wd"], precision=hp) + p["bd"]
    h = _ref_ln(h + x, p["ln1w"], p["ln1b"])
    t = _ref_gelu(jnp.matmul(h, p["w1"], precision=hp) + p["b1"])
    t2 = jnp.matmul(t, p["w2"], precision=hp) + p["b2"]
    h2 = _ref_ln(t2 + h, p["ln2w"], p["ln2b"])
    u1 = _ref_gelu(jnp.matmul(u, p["wu1"], precision=hp) + p["bu1"])
    u2 = jnp.matmul(u1, p["wu2"], precision=hp) + p["bu2"]
    uo = _ref_ln(u2 + u, p["lnuw"], p["lnub"])
    return h2, uo, probs


if __name__ == "__main__":
    B, S, H = 2, 8, 32
    num_attention_heads = 2
    head_size = H // num_attention_heads
    num_hidden_layers = 2

    key = jax.random.PRNGKey(0)
    k1, k2, kp = jax.random.split(key, 3)
    hidden_states = jax.random.normal(k1, (B, S, H), jnp.float32)
    user_states = jax.random.normal(k2, (B, H), jnp.float32)
    attention_mask = jnp.zeros((B, 1, S, S), jnp.float32)   # additive mask
    user_ids = jnp.arange(B, dtype=jnp.int32)               # unused by forward
    kkernel = jnp.zeros((B, S, S), jnp.float32)             # unused by forward

    params = init_params(kp, H)

    out_layers = dpp_encoder(hidden_states, user_states, attention_mask,
                             user_ids, kkernel, params,
                             num_hidden_layers, head_size,
                             output_all_encoded_layers=True)
    jax.block_until_ready(out_layers)

    # sanity check against the pure-JAX reference
    mask3 = attention_mask[:, 0]
    h_ref = hidden_states
    for (kh, ku, kpb) in out_layers:
        h_ref, u_ref, p_ref = _ref_layer(h_ref, user_states, mask3, params, head_size)
        assert jnp.allclose(kh, h_ref, atol=2e-2, rtol=2e-2), "hidden mismatch"
        assert jnp.allclose(ku, u_ref, atol=2e-2, rtol=2e-2), "user mismatch"
        assert jnp.allclose(kpb, p_ref, atol=2e-2, rtol=2e-2), "probs mismatch"
        assert bool(jnp.all(jnp.isfinite(kh))) and bool(jnp.all(jnp.isfinite(kpb)))

    print("KERNEL_OK")
</pallas_src>

<mosaic_0001>
module attributes {stable_mosaic.version = 11 : i64} {
  func.func @user_path_kernel(%arg0: i32, %arg1: memref<2x32xf32, #tpu.memory_space<vmem>>, %arg2: memref<32x128xf32, #tpu.memory_space<vmem>>, %arg3: memref<1x128xf32, #tpu.memory_space<vmem>>, %arg4: memref<128x32xf32, #tpu.memory_space<vmem>>, %arg5: memref<1x32xf32, #tpu.memory_space<vmem>>, %arg6: memref<1x32xf32, #tpu.memory_space<vmem>>, %arg7: memref<1x32xf32, #tpu.memory_space<vmem>>, %arg8: memref<2x32xf32, #tpu.memory_space<vmem>>) attributes {dimension_semantics = [#tpu.dimension_semantics<arbitrary>], iteration_bounds = array<i64: 1>, scalar_prefetch = 0 : i64, scratch_operands = 0 : i64, tpu.core_type = #tpu.core_type<tc>, window_params = [{pipeline_mode = #tpu.pipeline_mode<synchronous>, transform_indices = @transform_0, window_bounds = array<i64: 2, 32>}, {pipeline_mode = #tpu.pipeline_mode<synchronous>, transform_indices = @transform_1, window_bounds = array<i64: 32, 128>}, {pipeline_mode = #tpu.pipeline_mode<synchronous>, transform_indices = @transform_2, window_bounds = array<i64: 1, 128>}, {pipeline_mode = #tpu.pipeline_mode<synchronous>, transform_indices = @transform_3, window_bounds = array<i64: 128, 32>}, {pipeline_mode = #tpu.pipeline_mode<synchronous>, transform_indices = @transform_4, window_bounds = array<i64: 1, 32>}, {pipeline_mode = #tpu.pipeline_mode<synchronous>, transform_indices = @transform_5, window_bounds = array<i64: 1, 32>}, {pipeline_mode = #tpu.pipeline_mode<synchronous>, transform_indices = @transform_6, window_bounds = array<i64: 1, 32>}, {pipeline_mode = #tpu.pipeline_mode<synchronous>, transform_indices = @transform_7, window_bounds = array<i64: 2, 32>}]} {
    %c0 = arith.constant 0 : index
    %c0_0 = arith.constant 0 : index
    %0 = vector.load %arg1[%c0, %c0_0] : memref<2x32xf32, #tpu.memory_space<vmem>>, vector<2x32xf32>
    %c0_1 = arith.constant 0 : index
    %c0_2 = arith.constant 0 : index
    %1 = vector.load %arg2[%c0_1, %c0_2] : memref<32x128xf32, #tpu.memory_space<vmem>>, vector<32x128xf32>
    %cst = arith.constant dense<0.000000e+00> : vector<2x128xf32>
    %2 = tpu.matmul %0, %1, %cst {dimension_numbers = #tpu.dot_dimension_numbers<[1], [0], [0], [1], [0, 0, 1, 1], [], []>} : vector<2x32xf32>, vector<32x128xf32>, vector<2x128xf32> -> vector<2x128xf32>
    %c0_3 = arith.constant 0 : index
    %c0_4 = arith.constant 0 : index
    %3 = vector.load %arg3[%c0_3, %c0_4] : memref<1x128xf32, #tpu.memory_space<vmem>>, vector<1x128xf32>
    %4 = vector.broadcast %3 : vector<1x128xf32> to vector<2x128xf32>
    %5 = arith.addf %2, %4 : vector<2x128xf32>
    %cst_5 = arith.constant 5.000000e-01 : f32
    %6 = vector.broadcast %cst_5 : f32 to vector<2x128xf32>
    %7 = arith.mulf %5, %6 : vector<2x128xf32>
    %cst_6 = arith.constant 1.41421354 : f32
    %8 = vector.broadcast %cst_6 : f32 to vector<2x128xf32>
    %9 = arith.divf %5, %8 : vector<2x128xf32>
    %10 = math.erf %9 : vector<2x128xf32>
    %cst_7 = arith.constant 1.000000e+00 : f32
    %11 = vector.broadcast %cst_7 : f32 to vector<2x128xf32>
    %12 = arith.addf %11, %10 : vector<2x128xf32>
    %13 = arith.mulf %7, %12 : vector<2x128xf32>
    %c0_8 = arith.constant 0 : index
    %c0_9 = arith.constant 0 : index
    %14 = vector.load %arg4[%c0_8, %c0_9] : memref<128x32xf32, #tpu.memory_space<vmem>>, vector<128x32xf32>
    %cst_10 = arith.constant dense<0.000000e+00> : vector<2x32xf32>
    %15 = tpu.matmul %13, %14, %cst_10 {dimension_numbers = #tpu.dot_dimension_numbers<[1], [0], [0], [1], [0, 0, 1, 1], [], []>} : vector<2x128xf32>, vector<128x32xf32>, vector<2x32xf32> -> vector<2x32xf32>
    %c0_11 = arith.constant 0 : index
    %c0_12 = arith.constant 0 : index
    %16 = vector.load %arg5[%c0_11, %c0_12] : memref<1x32xf32, #tpu.memory_space<vmem>>, vector<1x32xf32>
    %17 = vector.broadcast %16 : vector<1x32xf32> to vector<2x32xf32>
    %18 = arith.addf %15, %17 : vector<2x32xf32>
    %19 = arith.addf %18, %0 : vector<2x32xf32>
    %c0_13 = arith.constant 0 : index
    %c0_14 = arith.constant 0 : index
    %20 = vector.load %arg6[%c0_13, %c0_14] : memref<1x32xf32, #tpu.memory_space<vmem>>, vector<1x32xf32>
    %c0_15 = arith.constant 0 : index
    %c0_16 = arith.constant 0 : index
    %21 = vector.load %arg7[%c0_15, %c0_16] : memref<1x32xf32, #tpu.memory_space<vmem>>, vector<1x32xf32>
    %cst_17 = arith.constant dense<0.000000e+00> : vector<2xf32>
    %22 = vector.multi_reduction <add>, %19, %cst_17 [1] : vector<2x32xf32> to vector<2xf32>
    %23 = vector.shape_cast %22 : vector<2xf32> to vector<2x1xf32>
    %cst_18 = arith.constant 3.200000e+01 : f32
    %24 = vector.broadcast %cst_18 : f32 to vector<2x1xf32>
    %25 = arith.divf %23, %24 : vector<2x1xf32>
    %26 = vector.broadcast %25 : vector<2x1xf32> to vector<2x32xf32>
    %27 = arith.subf %19, %26 : vector<2x32xf32>
    %28 = arith.mulf %27, %27 : vector<2x32xf32>
    %cst_19 = arith.constant dense<0.000000e+00> : vector<2xf32>
    %29 = vector.multi_reduction <add>, %28, %cst_19 [1] : vector<2x32xf32> to vector<2xf32>
    %30 = vector.shape_cast %29 : vector<2xf32> to vector<2x1xf32>
    %cst_20 = arith.constant 3.200000e+01 : f32
    %31 = vector.broadcast %cst_20 : f32 to vector<2x1xf32>
    %32 = arith.divf %30, %31 : vector<2x1xf32>
    %cst_21 = arith.constant 9.99999996E-13 : f32
    %33 = vector.broadcast %cst_21 : f32 to vector<2x1xf32>
    %34 = arith.addf %32, %33 : vector<2x1xf32>
    %35 = math.rsqrt %34 : vector<2x1xf32>
    %36 = vector.broadcast %35 : vector<2x1xf32> to vector<2x32xf32>
    %37 = arith.mulf %27, %36 : vector<2x32xf32>
    %38 = vector.broadcast %20 : vector<1x32xf32> to vector<2x32xf32>
    %39 = arith.mulf %38, %37 : vector<2x32xf32>
    %40 = vector.broadcast %21 : vector<1x32xf32> to vector<2x32xf32>
    %41 = arith.addf %39, %40 : vector<2x32xf32>
    %c0_22 = arith.constant 0 : index
    %c0_23 = arith.constant 0 : index
    %42 = vector.load %arg8[%c0_22, %c0_23] : memref<2x32xf32, #tpu.memory_space<vmem>>, vector<2x32xf32>
    tpu.vector_store %arg8[%c0_22, %c0_23], %41 {strides = array<i32>} : memref<2x32xf32, #tpu.memory_space<vmem>>, vector<2x32xf32>,
    return
  }
  func.func @transform_0(%arg0: i32) -> (i32, i32) {
    %c0_i32 = arith.constant 0 : i32
    %c0_i32_0 = arith.constant 0 : i32
    %c0_i32_1 = arith.constant 0 : i32
    return %c0_i32, %c0_i32_0 : i32, i32
  }
  func.func @transform_1(%arg0: i32) -> (i32, i32) {
    %c0_i32 = arith.constant 0 : i32
    %c0_i32_0 = arith.constant 0 : i32
    %c0_i32_1 = arith.constant 0 : i32
    return %c0_i32, %c0_i32_0 : i32, i32
  }
  func.func @transform_2(%arg0: i32) -> (i32, i32) {
    %c0_i32 = arith.constant 0 : i32
    %c0_i32_0 = arith.constant 0 : i32
    %c0_i32_1 = arith.constant 0 : i32
    return %c0_i32, %c0_i32_0 : i32, i32
  }
  func.func @transform_3(%arg0: i32) -> (i32, i32) {
    %c0_i32 = arith.constant 0 : i32
    %c0_i32_0 = arith.constant 0 : i32
    %c0_i32_1 = arith.constant 0 : i32
    return %c0_i32, %c0_i32_0 : i32, i32
  }
  func.func @transform_4(%arg0: i32) -> (i32, i32) {
    %c0_i32 = arith.constant 0 : i32
    %c0_i32_0 = arith.constant 0 : i32
    %c0_i32_1 = arith.constant 0 : i32
    return %c0_i32, %c0_i32_0 : i32, i32
  }
  func.func @transform_5(%arg0: i32) -> (i32, i32) {
    %c0_i32 = arith.constant 0 : i32
    %c0_i32_0 = arith.constant 0 : i32
    %c0_i32_1 = arith.constant 0 : i32
    return %c0_i32, %c0_i32_0 : i32, i32
  }
  func.func @transform_6(%arg0: i32) -> (i32, i32) {
    %c0_i32 = arith.constant 0 : i32
    %c0_i32_0 = arith.constant 0 : i32
    %c0_i32_1 = arith.constant 0 : i32
    return %c0_i32, %c0_i32_0 : i32, i32
  }
  func.func @transform_7(%arg0: i32) -> (i32, i32) {
    %c0_i32 = arith.constant 0 : i32
    %c0_i32_0 = arith.constant 0 : i32
    %c0_i32_1 = arith.constant 0 : i32
    return %c0_i32, %c0_i32_0 : i32, i32
  }
}

</mosaic_0001>

<llo_original>
// kernel: tpu_custom_call.1
$region0: #{tpu_custom_call.1}
  #allocation0 [shape = 'u32[]', space=smem, size = 0x4, offset = 0x4, fixed_abs, tag = 'smem constant byte address 0x4 - core index']
  #allocation1 [shape = 'u32[144,128]{1,0:T(1,128)}', space=vmem, size = 0x12000, scoped, tag = 'internal scratch']
  %s0 = inlined_call_operand.vmem [shape: f32[2,32], index: 0, kind: input, shape index: {}]
  %s1 = inlined_call_operand.vmem [shape: f32[32,128], index: 1, kind: input, shape index: {}]
  %s2 = inlined_call_operand.vmem [shape: f32[1,128], index: 2, kind: input, shape index: {}]
  %s3 = inlined_call_operand.vmem [shape: f32[128,32], index: 3, kind: input, shape index: {}]
  %s4 = inlined_call_operand.vmem [shape: f32[1,32], index: 4, kind: input, shape index: {}]
  %s5 = inlined_call_operand.vmem [shape: f32[1,32], index: 5, kind: input, shape index: {}]
  %s6 = inlined_call_operand.vmem [shape: f32[1,32], index: 6, kind: input, shape index: {}]
  %s7 = inlined_call_operand.hbm [shape: f32[2,32], index: 7, kind: output, shape index: {}]
  %s8 = sld [smem:[#allocation0]]
  $region38: #{tpu_custom_call.1} parent=0
    _
  %s10 = ssub.s32 1, %s8
  %s11 = scalar_select 0, %s10, %s8
  $region1: #{tpu_custom_call.1} parent=0
    #allocation2 [shape = 'u8[1024]{0}', space=vmem, size = 0x400, scoped, tag = 'output window, operand 0, single buffered']
    #allocation3 [shape = 's32[1]{0}', space=sflag, size = 0x4, scoped, tag = 'scoped memory for tpu_custom_call.1']
    %12 = vsyncpa [#allocation3], 0
    // Predicated region
    $region2: #{tpu_custom_call.1} parent=1 // pred_check
      _
    $region3: #{tpu_custom_call.1} parent=1 // pred_check_branch
      %14 = sbr.rel (0) target = $region5
    $region4: #{tpu_custom_call.1} parent=1 // pred_region
      _
    $region5: #{tpu_custom_call.1} parent=1 // pred_fallthru
      _
    // Predicated region
    $region6: #{tpu_custom_call.1} parent=1 // pred_check
      _
    $region7: #{tpu_custom_call.1} parent=1 // pred_check_branch
      %16 = sbr.rel (0) target = $region9
    $region8: #{tpu_custom_call.1} parent=1 // pred_region
      _
    $region9: #{tpu_custom_call.1} parent=1 // pred_fallthru
      _
    // Predicated region
    $region10: #{tpu_custom_call.1} parent=1 // pred_check
      _
    $region11: #{tpu_custom_call.1} parent=1 // pred_check_branch
      %18 = sbr.rel (0) target = $region13
    $region12: #{tpu_custom_call.1} parent=1 // pred_region
      _
    $region13: #{tpu_custom_call.1} parent=1 // pred_fallthru
      _
    // Predicated region
    $region14: #{tpu_custom_call.1} parent=1 // pred_check
      _
    $region15: #{tpu_custom_call.1} parent=1 // pred_check_branch
      %20 = sbr.rel (0) target = $region17
    $region16: #{tpu_custom_call.1} parent=1 // pred_region
      _
    $region17: #{tpu_custom_call.1} parent=1 // pred_fallthru
      _
    // Predicated region
    $region18: #{tpu_custom_call.1} parent=1 // pred_check
      _
    $region19: #{tpu_custom_call.1} parent=1 // pred_check_branch
      %22 = sbr.rel (0) target = $region21
    $region20: #{tpu_custom_call.1} parent=1 // pred_region
      _
    $region21: #{tpu_custom_call.1} parent=1 // pred_fallthru
      _
    // Predicated region
    $region22: #{tpu_custom_call.1} parent=1 // pred_check
      _
    $region23: #{tpu_custom_call.1} parent=1 // pred_check_branch
      %24 = sbr.rel (0) target = $region25
    $region24: #{tpu_custom_call.1} parent=1 // pred_region
      _
    $region25: #{tpu_custom_call.1} parent=1 // pred_fallthru
      _
    // Predicated region
    $region26: #{tpu_custom_call.1} parent=1 // pred_check
      _
    $region27: #{tpu_custom_call.1} parent=1 // pred_check_branch
      %26 = sbr.rel (0) target = $region29
    $region28: #{tpu_custom_call.1} parent=1 // pred_region
      _
    $region29: #{tpu_custom_call.1} parent=1 // pred_fallthru
      _
    %v27 = vld [vmem:[%s0] sm:$0x3]
    %v28 = vld [vmem:[%s1] sm:$0xff]
    %v29 = vld [vmem:[%s1 + $0x8] sm:$0xff]
    %v30 = vld [vmem:[%s1 + $0x10] sm:$0xff]
    %v31 = vld [vmem:[%s1 + $0x18] sm:$0xff]
    %v32 = vld [vmem:[%s2] sm:$0x1]
    %v34 = vlaneseq
    %v35 = vshrl.u32 %v34, 7
    %v36 = vsub.s32 0, %v35
    %v37 = vrot.slane %v32, %v36
    %vm39 = vcmask 261120
    %v41 = vsel %vm39, %v27, 0
    %43 = vmatprep.subr.mxu0 0.0
    %44 = vmatpush1.msra.mxu0 %v28
    %45 = vmatprep.subr.mxu0 0.0
    %46 = vmatpush1.msra.mxu0 %v29
    %47 = vmatprep.subr.mxu0 0.0
    %48 = vmatpush1.msra.mxu0 %v30
    %49 = vmatprep.subr.mxu0 0.0
    %50 = vmatpush1.msra.mxu0 %v31
    %51 = vmatprep.subr.mxu0 0.0
    %52 = vmatpush1.msra.mxu0 0.0
    %53 = vmatprep.subr.mxu0 0.0
    %54 = vmatpush1.msra.mxu0 0.0
    %55 = vmatprep.subr.mxu0 0.0
    %56 = vmatpush1.msra.mxu0 0.0
    %57 = vmatprep.subr.mxu0 0.0
    %58 = vmatpush1.msra.mxu0 0.0
    %59 = vmatprep.subr.mxu0 0.0
    %60 = vmatpush1.msra.mxu0 0.0
    %61 = vmatprep.subr.mxu0 0.0
    %62 = vmatpush1.msra.mxu0 0.0
    %63 = vmatprep.subr.mxu0 0.0
    %64 = vmatpush1.msra.mxu0 0.0
    %65 = vmatprep.subr.mxu0 0.0
    %66 = vmatpush1.msra.mxu0 0.0
    %67 = vmatprep.subr.mxu0 0.0
    %68 = vmatpush1.msra.mxu0 0.0
    %69 = vmatprep.subr.mxu0 0.0
    %70 = vmatpush1.msra.mxu0 0.0
    %71 = vmatprep.subr.mxu0 0.0
    %72 = vmatpush1.msra.mxu0 0.0
    %73 = vmatprep.subr.mxu0 0.0
    %74 = vmatpush1.msra.mxu0 0.0
    %75 = vmatprep.subr.mxu0 0.0
    %76 = vmatpush1.msra.mxu0 0.0
    %77 = vmatprep.subr.mxu0 0.0
    %78 = vmatpush1.msra.mxu0 0.0
    %79 = vmatprep.subr.mxu0 0.0
    %80 = vmatpush1.msra.mxu0 0.0
    %81 = vmatprep.subr.mxu0 0.0
    %82 = vmatpush1.msra.mxu0 0.0
    %83 = vmatprep.subr.mxu0 0.0
    %84 = vmatpush1.msra.mxu0 0.0
    %85 = vmatprep.subr.mxu0 0.0
    %86 = vmatpush1.msra.mxu0 0.0
    %87 = vmatprep.subr.mxu0 0.0
    %88 = vmatpush1.msra.mxu0 0.0
    %89 = vmatprep.subr.mxu0 0.0
    %90 = vmatpush1.msra.mxu0 0.0
    %91 = vmatprep.subr.mxu0 0.0
    %92 = vmatpush1.msra.mxu0 0.0
    %93 = vmatprep.subr.mxu0 0.0
    %94 = vmatpush1.msra.mxu0 0.0
    %95 = vmatprep.subr.mxu0 0.0
    %96 = vmatpush1.msra.mxu0 0.0
    %97 = vmatprep.subr.mxu0 0.0
    %98 = vmatpush1.msra.mxu0 0.0
    %99 = vmatprep.subr.mxu0 0.0
    %100 = vmatpush1.msra.mxu0 0.0
    %101 = vmatprep.subr.mxu0 0.0
    %102 = vmatpush1.msra.mxu0 0.0
    %103 = vmatprep.subr.mxu0 0.0
    %104 = vmatpush1.msra.mxu0 0.0
    %105 = vmatprep.subr.mxu0 0.0
    %106 = vmatpush1.msra.mxu0 0.0
    %107 = vmatprep.mubr.f32.mxu0 0.0
    %108 = vmatmul.mubr.f32.gmra.mrb[0].mxu0 %v41
    %v109 = vpop.f32.mrb[0].mxu0
    %v110 = vadd.f32 %v37, %v109
    %v111 = vpop.f32.mrb[0].mxu0
    %112 = vdwg.mxu0
    %v113 = vmul.f32 %v110, 0.5
    %v114 = vrcp.pop 1.4142135
    %v115 = vmul.f32 %v110, %v114
    %v116 = verf.f32.pop %v115
    %v117 = vadd.f32 %v116, 1.0
    %v118 = vmul.f32 %v113, %v117
    %v119 = vld [vmem:[%s3] sm:$0xff]
    %v120 = vld [vmem:[%s3 + $0x8] sm:$0xff]
    %v121 = vld [vmem:[%s3 + $0x10] sm:$0xff]
    %v122 = vld [vmem:[%s3 + $0x18] sm:$0xff]
    %v123 = vld [vmem:[%s3 + $0x20] sm:$0xff]
    %v124 = vld [vmem:[%s3 + $0x28] sm:$0xff]
    %v125 = vld [vmem:[%s3 + $0x30] sm:$0xff]
    %v126 = vld [vmem:[%s3 + $0x38] sm:$0xff]
    %v127 = vld [vmem:[%s3 + $0x40] sm:$0xff]
    %v128 = vld [vmem:[%s3 + $0x48] sm:$0xff]
    %v129 = vld [vmem:[%s3 + $0x50] sm:$0xff]
    %v130 = vld [vmem:[%s3 + $0x58] sm:$0xff]
    %v131 = vld [vmem:[%s3 + $0x60] sm:$0xff]
    %v132 = vld [vmem:[%s3 + $0x68] sm:$0xff]
    %v133 = vld [vmem:[%s3 + $0x70] sm:$0xff]
    %v134 = vld [vmem:[%s3 + $0x78] sm:$0xff]
    %v135 = vld [vmem:[%s4] sm:$0x1]
    %v137 = vlaneseq
    %v138 = vshrl.u32 %v137, 7
    %v139 = vsub.s32 0, %v138
    %v140 = vrot.slane %v135, %v139
    %142 = vmatprep.subr.mxu0 0.0
    %143 = vmatpush1.msra.mxu0 %v119
    %144 = vmatprep.subr.mxu0 0.0
    %145 = vmatpush1.msra.mxu0 %v120
    %146 = vmatprep.subr.mxu0 0.0
    %147 = vmatpush1.msra.mxu0 %v121
    %148 = vmatprep.subr.mxu0 0.0
    %149 = vmatpush1.msra.mxu0 %v122
    %150 = vmatprep.subr.mxu0 0.0
    %151 = vmatpush1.msra.mxu0 %v123
    %152 = vmatprep.subr.mxu0 0.0
    %153 = vmatpush1.msra.mxu0 %v124
    %154 = vmatprep.subr.mxu0 0.0
    %155 = vmatpush1.msra.mxu0 %v125
    %156 = vmatprep.subr.mxu0 0.0
    %157 = vmatpush1.msra.mxu0 %v126
    %158 = vmatprep.subr.mxu0 0.0
    %159 = vmatpush1.msra.mxu0 %v127
    %160 = vmatprep.subr.mxu0 0.0
    %161 = vmatpush1.msra.mxu0 %v128
    %162 = vmatprep.subr.mxu0 0.0
    %163 = vmatpush1.msra.mxu0 %v129
    %164 = vmatprep.subr.mxu0 0.0
    %165 = vmatpush1.msra.mxu0 %v130
    %166 = vmatprep.subr.mxu0 0.0
    %167 = vmatpush1.msra.mxu0 %v131
    %168 = vmatprep.subr.mxu0 0.0
    %169 = vmatpush1.msra.mxu0 %v132
    %170 = vmatprep.subr.mxu0 0.0
    %171 = vmatpush1.msra.mxu0 %v133
    %172 = vmatprep.subr.mxu0 0.0
    %173 = vmatpush1.msra.mxu0 %v134
    %174 = vmatprep.subr.mxu0 0.0
    %175 = vmatpush1.msra.mxu0 0.0
    %176 = vmatprep.subr.mxu0 0.0
    %177 = vmatpush1.msra.mxu0 0.0
    %178 = vmatprep.subr.mxu0 0.0
    %179 = vmatpush1.msra.mxu0 0.0
    %180 = vmatprep.subr.mxu0 0.0
    %181 = vmatpush1.msra.mxu0 0.0
    %182 = vmatprep.subr.mxu0 0.0
    %183 = vmatpush1.msra.mxu0 0.0
    %184 = vmatprep.subr.mxu0 0.0
    %185 = vmatpush1.msra.mxu0 0.0
    %186 = vmatprep.subr.mxu0 0.0
    %187 = vmatpush1.msra.mxu0 0.0
    %188 = vmatprep.subr.mxu0 0.0
    %189 = vmatpush1.msra.mxu0 0.0
    %190 = vmatprep.subr.mxu0 0.0
    %191 = vmatpush1.msra.mxu0 0.0
    %192 = vmatprep.subr.mxu0 0.0
    %193 = vmatpush1.msra.mxu0 0.0
    %194 = vmatprep.subr.mxu0 0.0
    %195 = vmatpush1.msra.mxu0 0.0
    %196 = vmatprep.subr.mxu0 0.0
    %197 = vmatpush1.msra.mxu0 0.0
    %198 = vmatprep.subr.mxu0 0.0
    %199 = vmatpush1.msra.mxu0 0.0
    %200 = vmatprep.subr.mxu0 0.0
    %201 = vmatpush1.msra.mxu0 0.0
    %202 = vmatprep.subr.mxu0 0.0
    %203 = vmatpush1.msra.mxu0 0.0
    %204 = vmatprep.subr.mxu0 0.0
    %205 = vmatpush1.msra.mxu0 0.0
    %206 = vmatprep.mubr.f32.mxu0 0.0
    %207 = vmatmul.mubr.f32.gmra.mrb[0].mxu0 %v118
    %v208 = vpop.f32.mrb[0].mxu0
    %v209 = vadd.f32 %v140, %v208
    %v210 = vpop.f32.mrb[0].mxu0
    %211 = vdwg.mxu0
    %v212 = vadd.f32 %v209, %v27
    %v213 = vld [vmem:[%s5] sm:$0x1]
    %v214 = vld [vmem:[%s6] sm:$0x1]
    %vm215 = vcmask 254976
    %v216 = vsel %vm215, %v212, 0.0
    %217 = vadd.xlane.f32.xlu0 %v216
    %v218 = vpop.xlane.xlu0 %217
    %v219 = vrcp.pop 32.0
    %v220 = vmul.f32 %v218, %v219
    %v221 = vsub.f32 %v212, %v220
    %v222 = vmul.f32 %v221, %v221
    %v223 = vsel %vm215, %v222, 0.0
    %224 = vadd.xlane.f32.xlu0 %v223
    %v225 = vpop.xlane.xlu0 %224
    %v226 = vmul.f32 %v225, %v219
    %v227 = vadd.f32 %v226, 1e-12
    %v228 = vrsqrt.pop %v227
    %v229 = vmul.f32 %v221, %v228
    %v231 = vlaneseq
    %v232 = vshrl.u32 %v231, 7
    %v233 = vsub.s32 0, %v232
    %v234 = vrot.slane %v213, %v233
    %v236 = vmul.f32 %v234, %v229
    %v238 = vlaneseq
    %v239 = vshrl.u32 %v238, 7
    %v240 = vsub.s32 0, %v239
    %v241 = vrot.slane %v214, %v240
    %v243 = vadd.f32 %v236, %v241
    %244 = vst.msk [vmem:[#allocation2] sm:$0x3] %vm215, %v243
    // Predicated region
    $region30: #{tpu_custom_call.1} parent=1 // pred_check
      _
    $region31: #{tpu_custom_call.1} parent=1 // pred_check_branch
      %246 = sbr.rel (0) target = $region33
    $region32: #{tpu_custom_call.1} parent=1 // pred_region
      %s248 = ssub.s32 32, 32
      %249 = vsyncadd [#allocation3], %s248
      %s251 = sshll.u32 [#allocation2], 4
      %s252 = int_to_ptr.vmem [resolvable:$true] %s251
      %254 = dma.vmem_to_hbm [thread:$0]  %s252, 32, %s7, [#allocation3]
    $region33: #{tpu_custom_call.1} parent=1 // pred_fallthru
      _
    // Predicated region
    $region34: #{tpu_custom_call.1} parent=1 // pred_check
      _
    $region35: #{tpu_custom_call.1} parent=1 // pred_check_branch
      %256 = sbr.rel (0) target = $region37
    $region36: #{tpu_custom_call.1} parent=1 // pred_region
      %257 = dma.done [#allocation3], 32
    $region37: #{tpu_custom_call.1} parent=1 // pred_fallthru
      _
    %258 = vsyncpa [#allocation3], 1

</llo_original>
